<compile_context>
chip_gen: v7x
topology: tpu7x:2x2x1
jax: 0.10.0
libtpu: 0.0.40
codegen_flags: <defaults>
</compile_context>

<pallas_src>
import functools

import numpy as np
import jax
import jax.numpy as jnp
from jax import lax
from jax.experimental import pallas as pl
from jax.experimental.pallas import tpu as pltpu


# ----------------------------------------------------------------------------
# small helpers
# ----------------------------------------------------------------------------
def _round_up(x, m):
    return ((x + m - 1) // m) * m


def _vmem_info():
    """Generation-aware VMEM sizing (v5e/v6e: 128 MiB physical, v7x: 64 MiB)."""
    cap = 64 * 2**20
    try:
        cap = int(getattr(pltpu.get_tpu_info(), "vmem_capacity_bytes", cap))
    except Exception:
        pass
    if cap >= 100 * 2**20:           # v5e / v6e : 128 MiB physical VMEM
        temps_budget = 40 * 2**20
        vmem_limit = 96 * 2**20
        attr_budget = 24 * 2**20
    else:                             # v7x : 64 MiB physical VMEM
        temps_budget = 16 * 2**20
        vmem_limit = 48 * 2**20
        attr_budget = 10 * 2**20
    return temps_budget, vmem_limit, attr_budget


def _pick_frames_per_block(N, elems_per_frame, steps_per_group=1,
                           lane_target=2048, min_parallel=2):
    """Largest divisor of N so each grid step carries >= lane_target elems of work,
    while keeping at least `min_parallel` parallel grid steps (v7x dual TensorCore)."""
    target = max(1, lane_target // max(elems_per_frame, 1))
    nb = 1
    for cand in range(1, N + 1):
        if N % cand == 0 and cand <= target:
            nb = cand
    while nb > 1 and (N // nb) * steps_per_group < min_parallel:
        cand = nb - 1
        while cand >= 1 and N % cand:
            cand -= 1
        nb = max(1, cand)
    return nb


# ----------------------------------------------------------------------------
# Pallas kernels
# ----------------------------------------------------------------------------
def _raster_kernel(attr_ref, pxy_ref, out_ref, bz_ref, *, C, TP, FT, Nb, RESIDENT):
    # attr_ref: resident (Nb, F_pad, K) slab (or (Nb, FT, K) tile in the fallback path)
    #   K = 9 (a0,b0,c0,a1,b1,c1,zx,zy,zc) + 3*C ([gx_0..gx_{C-1}, gy_0.., gc_0..])
    # pxy_ref : (2, TP) pixel NDC coords for this pixel tile (row0 = px, row1 = py)
    # out_ref : (Nb, C+1, TP) resident across the face axis (channel accumulator + mask row)
    # bz_ref  : (Nb, 1, TP) running best-z scratch
    NEG = jnp.float32(-1e30)
    f_idx = pl.program_id(2)
    n_f = pl.num_programs(2)

    @pl.when(f_idx == 0)
    def _init():
        out_ref[...] = jnp.zeros_like(out_ref)
        bz_ref[...] = jnp.full_like(bz_ref, NEG)

    px = pxy_ref[0:1, :]                               # (1, TP)
    py = pxy_ref[1:2, :]

    if RESIDENT:
        fstart = pl.multiple_of(f_idx * FT, FT)        # face-tile slice into the resident slab

    def frame_body(b):
        if RESIDENT:
            A = attr_ref[pl.ds(b, 1), pl.ds(fstart, FT), :][0]    # (FT, K)
        else:
            A = attr_ref[pl.ds(b, 1), :, :][0]                    # (FT, K)
        a0 = A[:, 0:1]; b0 = A[:, 1:2]; c0 = A[:, 2:3]
        a1 = A[:, 3:4]; b1 = A[:, 4:5]; c1 = A[:, 5:6]
        zx = A[:, 6:7]; zy = A[:, 7:8]; zc = A[:, 8:9]

        # barycentric weights as affine functions of the pixel (1/area pre-folded)
        w0 = a0 * px + b0 * py + c0                    # (FT, TP)
        w1 = a1 * px + b1 * py + c1
        inside = (w0 >= 0.0) & (w1 >= 0.0) & (w0 + w1 <= 1.0)
        z = zx * px + zy * py + zc                     # interpolated camera z (plane eval)
        zm = jnp.where(inside, z, NEG)
        tb = jnp.max(zm, axis=0, keepdims=True)        # (1, TP) best z of this face tile
        sel = (zm >= tb).astype(jnp.float32)           # winners (garbage when no coverage,
        cnt = jnp.sum(sel, axis=0, keepdims=True)      #  but the take-gate below never writes)
        inv = 1.0 / jnp.maximum(cnt, 1.0)              # exact tie averaging

        # winner-weighted feature coefficients on the MXU:  S[j,p] = sum_f G[f,j]*sel[f,p]
        G = A[:, 9:9 + 3 * C]                          # (FT, 3C)
        S = lax.dot_general(G, sel, (((0,), (0,)), ((), ())),
                            preferred_element_type=jnp.float32)   # (3C, TP)
        ch = (S[0:C] * px + S[C:2 * C] * py + S[2 * C:3 * C]) * inv   # (C, TP)

        run_bz = bz_ref[pl.ds(b, 1), :, :]             # (1, 1, TP)
        take = tb[None] > run_bz                       # earlier face tiles win exact ties
        bz_ref[pl.ds(b, 1), :, :] = jnp.maximum(tb[None], run_bz)
        prev = out_ref[pl.ds(b, 1), 0:C, :]            # (1, C, TP)
        out_ref[pl.ds(b, 1), 0:C, :] = jnp.where(take, ch[None], prev)

    if Nb == 1:
        frame_body(0)
    else:
        # fori_loop (not a Python unroll) bounds the live (FT,TP) temporaries to one frame.
        def _loop_body(b, carry):
            frame_body(b)
            return carry
        lax.fori_loop(0, Nb, _loop_body, 0)

    @pl.when(f_idx == n_f - 1)
    def _finalize():
        # TODO(synk): DIBR soft mask (sigmainv / knum soft aggregation) approximated by hard coverage.
        out_ref[:, C:C + 1, :] = (bz_ref[...] > jnp.float32(-1e29)).astype(jnp.float32)


def _erosion_kernel(m_ref, o_ref, *, W, k):
    # Separable k x k min filter on a (nb, H_pad, W_pad) tile.
    # Rows >= H and all explicit padding were pre-filled with BIG in the wrapper, so only
    # the horizontal pass needs an in-image column mask (wrap-around / right border).
    BIG = jnp.float32(1e4)
    x = m_ref[...]                                     # (nb, Hp, Wp)
    nb, Hp, Wp = x.shape
    col = lax.broadcasted_iota(jnp.int32, (1, 1, Wp), 2)
    p0 = (k - 1) // 2
    offs = [d - p0 for d in range(k)]

    # horizontal pass: lane rolls (XLU) + column-validity mask
    acc = None
    for d in offs:
        if d == 0:
            cand = x
        else:
            cand = pltpu.roll(x, shift=(-d) % Wp, axis=2)
            ok = (col + d >= 0) & (col + d < W)
            cand = jnp.where(ok, cand, BIG)
        acc = cand if acc is None else jnp.minimum(acc, cand)

    # vertical pass: static sublane shifts with BIG fill (out-of-image rows -> BIG)
    out = None
    for d in offs:
        if d == 0:
            cand = acc
        else:
            fill = jnp.full((nb, abs(d), Wp), BIG, jnp.float32)
            if d > 0:
                cand = jnp.concatenate([acc[:, d:, :], fill], axis=1)
            else:
                cand = jnp.concatenate([fill, acc[:, :Hp + d, :]], axis=1)
        out = cand if out is None else jnp.minimum(out, cand)
    o_ref[...] = out


# ----------------------------------------------------------------------------
# Pallas wrappers
# ----------------------------------------------------------------------------
def _choose_raster_tiles(N, P, F, K, temps_budget, attr_budget):
    # face tile (sublanes): multiple of 8, capped at 512
    if F <= 512:
        FT = max(8, _round_up(F, 8))
    else:
        FT = 512
    # pixel tile (lanes): multiple of 128 dividing P, sized so ~8 live (FT,TP) f32 temps fit
    if P % 128 != 0:
        TP = P
        ft_cap = max(8, (temps_budget // (8 * 4 * max(P, 1))) // 8 * 8)
        FT = max(8, min(FT, ft_cap))
    else:
        cap = max(128, temps_budget // (8 * 4 * FT))
        TP = 128
        for t in (4096, 2048, 1024, 512, 256, 128):
            if t <= cap and P % t == 0:
                TP = t
                break
    F_pad = _round_up(F, FT)
    numP = P // TP
    nb = _pick_frames_per_block(N, TP, steps_per_group=numP)
    # resident attr slab cost in VMEM (lane-padded f32, double-buffered)
    slab_vmem = nb * _round_up(F_pad, 8) * max(128, _round_up(K, 128)) * 4 * 2
    resident = slab_vmem <= attr_budget
    return nb, TP, FT, F_pad, resident


def rasterize_pallas(face_attr, H, W, C):
    # face_attr: [N, F, K] affine/plane coefficients (K = 9 + 3*C) -> output [N, C+1, H, W]
    N, F, K = face_attr.shape
    P = H * W
    temps_budget, vmem_limit, attr_budget = _vmem_info()
    nb, TP, FT, F_pad, resident = _choose_raster_tiles(N, P, F, K, temps_budget, attr_budget)

    if F_pad > F:
        pad = jnp.zeros((N, F_pad - F, K), face_attr.dtype)
        pad = pad.at[:, :, 2].set(-1.0)        # c0 = -1 -> padded faces never cover a pixel
        face_attr = jnp.concatenate([face_attr, pad], axis=1)

    # pixel-center NDC coordinates, hoisted out of the kernel hot loop; row 0 is y = +1 (top)
    col = jnp.arange(P, dtype=jnp.int32)
    jj = (col % W).astype(jnp.float32)
    ii = (col // W).astype(jnp.float32)
    px = (jj + 0.5) * (2.0 / W) - 1.0
    py = 1.0 - (ii + 0.5) * (2.0 / H)
    pxy = jnp.stack([px, py], axis=0)          # (2, P)

    n_f = F_pad // FT
    grid = (N // nb, P // TP, n_f)

    attr_block = (nb, F_pad, K) if resident else (nb, FT, K)
    attr_index = (lambda g, p, f: (g, 0, 0)) if resident else (lambda g, p, f: (g, f, 0))

    attr_fetch = N * F_pad * K * 4 * (1 if resident else (P // TP))
    bytes_acc = int(attr_fetch + N * (C + 1) * P * 4 + (N // nb) * 2 * P * 4)
    flops = int(N) * int(F_pad) * int(P) * (14 + 6 * C)

    out = pl.pallas_call(
        functools.partial(_raster_kernel, C=C, TP=TP, FT=FT, Nb=nb, RESIDENT=resident),
        out_shape=jax.ShapeDtypeStruct((N, C + 1, P), jnp.float32),
        grid_spec=pltpu.PrefetchScalarGridSpec(
            num_scalar_prefetch=0,
            grid=grid,
            in_specs=[pl.BlockSpec(attr_block, attr_index),
                      pl.BlockSpec((2, TP), lambda g, p, f: (0, p))],
            out_specs=pl.BlockSpec((nb, C + 1, TP), lambda g, p, f: (g, 0, p)),
            scratch_shapes=[pltpu.VMEM((nb, 1, TP), jnp.float32)]),
        compiler_params=pltpu.CompilerParams(
            dimension_semantics=("parallel", "parallel", "arbitrary"),
            vmem_limit_bytes=vmem_limit),
        cost_estimate=pl.CostEstimate(flops=flops, transcendentals=int(N * P),
                                      bytes_accessed=bytes_acc),
    )(face_attr, pxy)
    return out.reshape(N, C + 1, H, W)


def erode_pallas(mask, k):
    # mask: [N, H, W] -> separable k x k min filter, out-of-image treated as a large value.
    N, H, W = mask.shape
    Hp = _round_up(max(H, 8), 8)
    Wp = _round_up(max(W, 128), 128)
    BIG = 1e4
    m = mask.astype(jnp.float32)
    if Hp != H or Wp != W:
        m = jnp.pad(m, ((0, 0), (0, Hp - H), (0, Wp - W)), constant_values=BIG)

    elems = Hp * Wp
    nb = _pick_frames_per_block(N, elems, steps_per_group=1, lane_target=16384)
    budget = 8 * 2**20
    while nb > 1 and nb * elems * 4 * 4 > budget:
        cand = nb - 1
        while cand >= 1 and N % cand:
            cand -= 1
        nb = max(1, cand)

    out = pl.pallas_call(
        functools.partial(_erosion_kernel, W=W, k=k),
        out_shape=jax.ShapeDtypeStruct((N, Hp, Wp), jnp.float32),
        grid=(N // nb,),
        in_specs=[pl.BlockSpec((nb, Hp, Wp), lambda n: (n, 0, 0))],
        out_specs=pl.BlockSpec((nb, Hp, Wp), lambda n: (n, 0, 0)),
        compiler_params=pltpu.CompilerParams(dimension_semantics=("parallel",)),
    )(m)
    return out[:, :H, :W]


# ----------------------------------------------------------------------------
# Geometry helpers (kornia / torchgeometry equivalents, plain JAX glue)
# ----------------------------------------------------------------------------
def quaternion_to_angle_axis(q):
    # q: [..., 4] in (w, x, y, z)
    q1, q2, q3 = q[..., 1], q[..., 2], q[..., 3]
    sin_sq = q1 * q1 + q2 * q2 + q3 * q3
    sin_t = jnp.sqrt(sin_sq)
    cos_t = q[..., 0]
    two_theta = 2.0 * jnp.where(cos_t < 0.0,
                                jnp.arctan2(-sin_t, -cos_t),
                                jnp.arctan2(sin_t, cos_t))
    k_pos = two_theta / jnp.where(sin_t == 0.0, 1.0, sin_t)
    k = jnp.where(sin_sq > 0.0, k_pos, 2.0)
    return jnp.stack([q1 * k, q2 * k, q3 * k], axis=-1)


def angle_axis_to_rotation_matrix(aa):
    # aa: [..., 3] -> [..., 3, 3] (Rodrigues)
    theta = jnp.sqrt(jnp.sum(aa * aa, axis=-1))
    safe = jnp.where(theta < 1e-8, 1.0, theta)
    axis = aa / safe[..., None]
    wx, wy, wz = axis[..., 0], axis[..., 1], axis[..., 2]
    ct, st = jnp.cos(theta), jnp.sin(theta)
    oc = 1.0 - ct
    r0 = jnp.stack([ct + wx * wx * oc, wx * wy * oc - wz * st, wx * wz * oc + wy * st], -1)
    r1 = jnp.stack([wy * wx * oc + wz * st, ct + wy * wy * oc, wy * wz * oc - wx * st], -1)
    r2 = jnp.stack([wz * wx * oc - wy * st, wz * wy * oc + wx * st, ct + wz * wz * oc], -1)
    return jnp.stack([r0, r1, r2], axis=-2)


# ----------------------------------------------------------------------------
# The module
# ----------------------------------------------------------------------------
class RenderingKaolinMulti:
    def __init__(self, config, faces, width, height):
        self.config = config
        self.width = width
        self.height = height
        # kaolin.generate_perspective_projection(1.57/2, width/height) equivalent
        tanhalf = float(np.tan((1.57 / 2) / 2.0))
        aspect = width / height
        self.fy = 1.0 / tanhalf
        self.fx = 1.0 / (tanhalf * aspect)
        # look-at camera at (0,0,d) -> origin, up (0,1,0): camera rotation = identity
        self.camera_trans = jnp.array([0.0, 0.0, config['camera_distance']], jnp.float32)
        self.obj_center = jnp.zeros((1, 3), jnp.float32)
        self.set_faces(faces)

    def set_faces(self, faces):
        self.faces = jnp.asarray(np.asarray(faces), jnp.int32)

    # prepare_vertices + per-face affine/plane coefficient packing.
    def _prepare_face_attrs(self, vertices, face_features):
        # vertices: [M, V, 3], face_features: [M, F, 3, C]
        M = vertices.shape[0]
        F = self.faces.shape[0]
        C = face_features.shape[-1]
        v_cam = (vertices - self.camera_trans).astype(jnp.float32)   # camera rot = I
        negz = -v_cam[..., 2]
        # TODO(synk): no proper near-plane clipping; only guard against divide-by-zero.
        safe_negz = jnp.where(jnp.abs(negz) < 1e-8,
                              jnp.where(negz < 0, -1e-8, 1e-8), negz)
        x_img = v_cam[..., 0] * self.fx / safe_negz
        y_img = v_cam[..., 1] * self.fy / safe_negz

        fvc = v_cam[:, self.faces]                       # [M, F, 3, 3]
        xi = x_img[:, self.faces]                        # [M, F, 3]
        yi = y_img[:, self.faces]
        x0, x1, x2 = xi[..., 0], xi[..., 1], xi[..., 2]
        y0, y1, y2 = yi[..., 0], yi[..., 1], yi[..., 2]
        z0, z1, z2 = fvc[..., 0, 2], fvc[..., 1, 2], fvc[..., 2, 2]

        e1 = fvc[:, :, 1] - fvc[:, :, 0]
        e2 = fvc[:, :, 2] - fvc[:, :, 0]
        n = jnp.cross(e1, e2)
        n = n / (jnp.linalg.norm(n, axis=-1, keepdims=True) + 1e-12)
        nz = n[..., 2]

        d = (y1 - y2) * (x0 - x2) + (x2 - x1) * (y0 - y2)     # twice signed area
        d_ok = jnp.abs(d) > 1e-10
        valid = d_ok & (nz > 0.0)                              # back-face cull + degenerate cull
        inv_d = jnp.where(valid, 1.0 / jnp.where(d_ok, d, 1.0), 0.0)

        # w0 = a0*px + b0*py + c0, w1 = a1*px + b1*py + c1, w2 = 1 - w0 - w1
        a0 = (y1 - y2) * inv_d
        b0 = (x2 - x1) * inv_d
        c0 = jnp.where(valid, -(y1 - y2) * x2 * inv_d - (x2 - x1) * y2 * inv_d, -1.0)
        a1 = (y2 - y0) * inv_d
        b1 = (x0 - x2) * inv_d
        c1 = -(y2 - y0) * x2 * inv_d - (x0 - x2) * y2 * inv_d
        a2 = -(a0 + a1)
        b2 = -(b0 + b1)
        c2 = jnp.where(valid, 1.0 - c0 - c1, 0.0)

        # plane coefficients for interpolated camera z and each feature channel
        zx = a0 * z0 + a1 * z1 + a2 * z2
        zy = b0 * z0 + b1 * z1 + b2 * z2
        zc = c0 * z0 + c1 * z1 + c2 * z2

        Wx = jnp.stack([a0, a1, a2], axis=-1)                  # [M, F, 3]
        Wy = jnp.stack([b0, b1, b2], axis=-1)
        Wc = jnp.stack([c0, c1, c2], axis=-1)
        ff = face_features.astype(jnp.float32)
        gx = jnp.einsum('mfv,mfvc->mfc', Wx, ff)
        gy = jnp.einsum('mfv,mfvc->mfc', Wy, ff)
        gc = jnp.einsum('mfv,mfvc->mfc', Wc, ff)
        # grouped layout [gx_0..gx_{C-1}, gy_0.., gc_0..] so the kernel can slice (C,TP) blocks
        gcoef = jnp.concatenate([gx, gy, gc], axis=-1)         # [M, F, 3C]

        base = jnp.stack([a0, b0, c0, a1, b1, c1, zx, zy, zc], axis=-1)   # [M, F, 9]
        return jnp.concatenate([base, gcoef], axis=-1).astype(jnp.float32)  # [M, F, 9+3C]

    def forward(self, obj):
        cfg = self.config
        fmo = int(cfg['fmo_steps'])
        nin = int(cfg['input_frames'])
        npieces = int(cfg['number_of_pieces'])
        terms = int(cfg['number_of_terms'])
        translation = obj['translation']                      # [B, 1, pieces, terms, 3]
        B = translation.shape[0]
        exp = jnp.asarray(obj['exp'], jnp.float32)

        sizes = jnp.sqrt(jnp.sum(translation[:, :, :, 1] ** 2, axis=(0, 1, 3))) + 1e-10
        prop_f = sizes / jnp.sum(sizes)
        # TODO(synk): frame counts are data-dependent -> device->host sync (as in the torch reference).
        prop = np.rint(np.asarray(jax.device_get(prop_f)) * fmo * nin).astype(np.int64)
        prop[0] = fmo * nin - prop[1:].sum()

        # ---- host-side frame schedule (piece id, linspace time, group-start time) ----
        piece_list, ti_list = [], []
        for pind in range(npieces):
            cnt = int(prop[pind])
            if cnt > 0:
                ti_list.append(np.linspace(0.0, 1.0, cnt))
                piece_list += [pind] * cnt
        ti_arr = (np.concatenate(ti_list) if ti_list else np.zeros((0,))).astype(np.float32)
        piece_idx = np.asarray(piece_list, np.int32)          # [T]
        T = int(ti_arr.shape[0])
        group_start = (np.arange(T) // fmo) * fmo
        tb_arr = ti_arr[group_start]                          # time_before per frame
        is_last = ((np.arange(T) + 1) % fmo) == 0             # last frame of each fmo group

        tes = jnp.asarray(tb_arr) + (jnp.asarray(ti_arr) - jnp.asarray(tb_arr)) * exp   # [T]

        # ---- per-frame rotations via one associative scan of 3x3 products ----
        rotation_divide = cfg['rotation_divide']
        R0 = angle_axis_to_rotation_matrix(
            quaternion_to_angle_axis(obj['quaternion'][:, 0, 0]))            # [B,3,3]
        aa = quaternion_to_angle_axis(obj['quaternion'][:, :, 1]) / rotation_divide   # [B,Pc,3]
        R_step = angle_axis_to_rotation_matrix(exp * aa / fmo)               # [B,Pc,3,3]
        R_noexp = angle_axis_to_rotation_matrix(aa * (1.0 - exp))
        step_t = R_step[:, piece_idx]                                        # [B,T,3,3]
        noexp_t = R_noexp[:, piece_idx]
        M = jnp.where(jnp.asarray(is_last)[None, :, None, None], noexp_t, step_t)
        seq = jnp.concatenate([R0[:, None], M[:, :T - 1]], axis=1)           # [B,T,3,3]
        Rs = lax.associative_scan(jnp.matmul, jnp.transpose(seq, (1, 0, 2, 3)), axis=0)  # [T,B,3,3]

        # ---- per-frame base translation (changes only between pieces) ----
        ts_piece = [translation[:, :, 0, 0]]
        for pind in range(npieces - 1):
            nxt = ts_piece[-1]
            for power_ind in range(1, terms):
                nxt = nxt + translation[:, :, pind, power_ind]
            ts_piece.append(nxt)
        ts_piece = jnp.stack(ts_piece, axis=0)                               # [Pc,B,1,3]
        tss = ts_piece[piece_idx]                                            # [T,B,1,3]

        if terms > 1:
            pows = jnp.stack([tes ** p for p in range(1, terms)], axis=-1)   # [T,terms-1]
            trans_sel = translation[:, :, piece_idx, 1:terms, :]             # [B,1,T,terms-1,3]
            poly = jnp.einsum('tp,bztpc->tbzc', pows, trans_sel)             # [T,B,1,3]
        else:
            poly = jnp.zeros((T, B, 1, 3), jnp.float32)

        unit_vertices = obj['vertices']                                      # [B,V,3]
        V = unit_vertices.shape[1]
        verts = jnp.einsum('bvj,tbij->tbvi', unit_vertices, Rs) + tss + poly  # [T,B,V,3]
        all_v = verts.reshape(T * B, V, 3)

        ff = obj['face_features']                                            # [B,F,3,C]
        C = ff.shape[-1]
        ff_all = jnp.broadcast_to(ff[None], (T,) + ff.shape).reshape((T * B,) + ff.shape[1:])

        attrs = self._prepare_face_attrs(all_v, ff_all)
        rgba = rasterize_pallas(attrs, self.height, self.width, C)           # [T*B, C+1, H, W]

        if obj.get('texture_maps') is not None:
            # TODO(synk): kaolin.render.mesh.texture_mapping (bilinear UV sampling) not implemented.
            raise NotImplementedError("texture_maps must be None")

        if cfg['erode_renderer_mask'] > 0:
            eroded = erode_pallas(rgba[:, C], int(cfg['erode_renderer_mask']))
            rgba = jnp.concatenate([rgba[:, :C], eroded[:, None]], axis=1)

        rgba = rgba.reshape(T, B, C + 1, self.height, self.width)
        n_groups = T // fmo
        all_renders = rgba.reshape(n_groups, fmo, B, C + 1, self.height, self.width)
        return jnp.transpose(all_renders, (2, 0, 1, 3, 4, 5))                # [B, n_groups, fmo, C+1, H, W]


# ----------------------------------------------------------------------------
# Example
# ----------------------------------------------------------------------------
if __name__ == "__main__":
    key = jax.random.PRNGKey(0)
    B, V, C = 2, 8, 3
    H = W = 16
    config = dict(camera_distance=2.0, fmo_steps=2, input_frames=2,
                  number_of_pieces=2, number_of_terms=2, rotation_divide=1.0,
                  sigmainv=7000, erode_renderer_mask=3)

    # cube mesh: 8 vertices, 12 triangle faces
    faces = np.array([
        [0, 1, 2], [0, 2, 3],
        [4, 6, 5], [4, 7, 6],
        [0, 4, 5], [0, 5, 1],
        [3, 2, 6], [3, 6, 7],
        [0, 3, 7], [0, 7, 4],
        [1, 5, 6], [1, 6, 2],
    ], np.int32)
    F = faces.shape[0]

    k1, k2, k3, k4 = jax.random.split(key, 4)
    base = jnp.array([[-1, -1, -1], [1, -1, -1], [1, 1, -1], [-1, 1, -1],
                      [-1, -1, 1], [1, -1, 1], [1, 1, 1], [-1, 1, 1]], jnp.float32) * 0.35
    vertices = (base[None] + 0.05 * jax.random.normal(k1, (B, V, 3))).astype(jnp.float32)
    translation = (0.2 * jax.random.normal(
        k2, (B, 1, config['number_of_pieces'], config['number_of_terms'], 3))).astype(jnp.float32)
    quat = jax.random.normal(k3, (B, config['number_of_pieces'], 2, 4))
    quat = (quat / jnp.linalg.norm(quat, axis=-1, keepdims=True)).astype(jnp.float32)
    face_features = jax.random.uniform(k4, (B, F, 3, C), dtype=jnp.float32)

    obj = dict(vertices=vertices,
               translation=translation,
               quaternion=quat,
               exp=jnp.float32(0.5),
               face_features=face_features,
               texture_maps=None)

    renderer = RenderingKaolinMulti(config, faces, W, H)
    out = renderer.forward(obj)
    out = jax.block_until_ready(out)
    assert out.shape == (B, config['input_frames'], config['fmo_steps'], C + 1, H, W), out.shape
    assert bool(jnp.all(jnp.isfinite(out)))
    print("KERNEL_OK")
</pallas_src>

<mosaic_0001>
module attributes {stable_mosaic.version = 11 : i64} {
  func.func @_raster_kernel(%arg0: i32, %arg1: i32, %arg2: i32, %arg3: memref<4x16x18xf32, #tpu.memory_space<vmem>>, %arg4: memref<2x256xf32, #tpu.memory_space<vmem>>, %arg5: memref<4x4x256xf32, #tpu.memory_space<vmem>>, %arg6: memref<4x1x256xf32, #tpu.memory_space<vmem>>) attributes {dimension_semantics = [#tpu.dimension_semantics<parallel>, #tpu.dimension_semantics<parallel>, #tpu.dimension_semantics<arbitrary>], iteration_bounds = array<i64: 2, 1, 1>, scalar_prefetch = 0 : i64, scratch_operands = 1 : i64, tpu.core_type = #tpu.core_type<tc>, window_params = [{transform_indices = @transform_0, window_bounds = array<i64: 4, 16, 18>}, {transform_indices = @transform_1, window_bounds = array<i64: 2, 256>}, {transform_indices = @transform_2, window_bounds = array<i64: 4, 4, 256>}]} {
    %c0_i32 = arith.constant 0 : i32
    %0 = arith.cmpi eq, %arg2, %c0_i32 : i32
    %1 = arith.extui %0 : i1 to i32
    %cst = arith.constant -1.000000e+30 : f32
    %c0_i32_0 = arith.constant 0 : i32
    %2 = arith.cmpi ne, %1, %c0_i32_0 : i32
    scf.if %2 {
      %cst_8 = arith.constant 0.000000e+00 : f32
      %11 = vector.broadcast %cst_8 : f32 to vector<4x4x256xf32>
      %c0_9 = arith.constant 0 : index
      %c0_10 = arith.constant 0 : index
      %c0_11 = arith.constant 0 : index
      %12 = vector.load %arg5[%c0_9, %c0_10, %c0_11] : memref<4x4x256xf32, #tpu.memory_space<vmem>>, vector<4x4x256xf32>
      tpu.vector_store %arg5[%c0_9, %c0_10, %c0_11], %11 {strides = array<i32>} : memref<4x4x256xf32, #tpu.memory_space<vmem>>, vector<4x4x256xf32>,
      %13 = vector.broadcast %cst : f32 to vector<4x1x256xf32>
      %c0_12 = arith.constant 0 : index
      %c0_13 = arith.constant 0 : index
      %c0_14 = arith.constant 0 : index
      %14 = vector.load %arg6[%c0_12, %c0_13, %c0_14] : memref<4x1x256xf32, #tpu.memory_space<vmem>>, vector<4x1x256xf32>
      tpu.vector_store %arg6[%c0_12, %c0_13, %c0_14], %13 {strides = array<i32>} : memref<4x1x256xf32, #tpu.memory_space<vmem>>, vector<4x1x256xf32>,
    } else {
    }
    %c0 = arith.constant 0 : index
    %c0_1 = arith.constant 0 : index
    %3 = vector.load %arg4[%c0, %c0_1] : memref<2x256xf32, #tpu.memory_space<vmem>>, vector<1x256xf32>
    %c1 = arith.constant 1 : index
    %c0_2 = arith.constant 0 : index
    %4 = vector.load %arg4[%c1, %c0_2] : memref<2x256xf32, #tpu.memory_space<vmem>>, vector<1x256xf32>
    %c16_i32 = arith.constant 16 : i32
    %5 = arith.muli %arg2, %c16_i32 : i32
    %6 = tpu.assume_multiple %5, 16 : i32
    %cst_3 = arith.constant -1.000000e+30 : f32
    %c0_i32_4 = arith.constant 0 : i32
    %c4_i32 = arith.constant 4 : i32
    %7 = arith.addi %c0_i32_4, %c4_i32 : i32
    %c1_i32 = arith.constant 1 : i32
    scf.for %arg7 = %c0_i32_4 to %7 step %c1_i32  : i32 {
      %11 = arith.index_cast %arg7 : i32 to index
      %12 = arith.index_cast %6 : i32 to index
      %c0_8 = arith.constant 0 : index
      %13 = vector.load %arg3[%11, %12, %c0_8] : memref<4x16x18xf32, #tpu.memory_space<vmem>>, vector<1x16x18xf32>
      %14 = vector.shape_cast %13 : vector<1x16x18xf32> to vector<16x18xf32>
      %15 = vector.extract_strided_slice %14 {offsets = [0, 0], sizes = [16, 1], strides = [1, 1]} : vector<16x18xf32> to vector<16x1xf32>
      %16 = vector.extract_strided_slice %14 {offsets = [0, 1], sizes = [16, 1], strides = [1, 1]} : vector<16x18xf32> to vector<16x1xf32>
      %17 = vector.extract_strided_slice %14 {offsets = [0, 2], sizes = [16, 1], strides = [1, 1]} : vector<16x18xf32> to vector<16x1xf32>
      %18 = vector.extract_strided_slice %14 {offsets = [0, 3], sizes = [16, 1], strides = [1, 1]} : vector<16x18xf32> to vector<16x1xf32>
      %19 = vector.extract_strided_slice %14 {offsets = [0, 4], sizes = [16, 1], strides = [1, 1]} : vector<16x18xf32> to vector<16x1xf32>
      %20 = vector.extract_strided_slice %14 {offsets = [0, 5], sizes = [16, 1], strides = [1, 1]} : vector<16x18xf32> to vector<16x1xf32>
      %21 = vector.extract_strided_slice %14 {offsets = [0, 6], sizes = [16, 1], strides = [1, 1]} : vector<16x18xf32> to vector<16x1xf32>
      %22 = vector.extract_strided_slice %14 {offsets = [0, 7], sizes = [16, 1], strides = [1, 1]} : vector<16x18xf32> to vector<16x1xf32>
      %23 = vector.extract_strided_slice %14 {offsets = [0, 8], sizes = [16, 1], strides = [1, 1]} : vector<16x18xf32> to vector<16x1xf32>
      %24 = vector.broadcast %15 : vector<16x1xf32> to vector<16x256xf32>
      %25 = vector.broadcast %3 : vector<1x256xf32> to vector<16x256xf32>
      %26 = arith.mulf %24, %25 : vector<16x256xf32>
      %27 = vector.broadcast %16 : vector<16x1xf32> to vector<16x256xf32>
      %28 = vector.broadcast %4 : vector<1x256xf32> to vector<16x256xf32>
      %29 = arith.mulf %27, %28 : vector<16x256xf32>
      %30 = arith.addf %26, %29 : vector<16x256xf32>
      %31 = vector.broadcast %17 : vector<16x1xf32> to vector<16x256xf32>
      %32 = arith.addf %30, %31 : vector<16x256xf32>
      %33 = vector.broadcast %18 : vector<16x1xf32> to vector<16x256xf32>
      %34 = vector.broadcast %3 : vector<1x256xf32> to vector<16x256xf32>
      %35 = arith.mulf %33, %34 : vector<16x256xf32>
      %36 = vector.broadcast %19 : vector<16x1xf32> to vector<16x256xf32>
      %37 = vector.broadcast %4 : vector<1x256xf32> to vector<16x256xf32>
      %38 = arith.mulf %36, %37 : vector<16x256xf32>
      %39 = arith.addf %35, %38 : vector<16x256xf32>
      %40 = vector.broadcast %20 : vector<16x1xf32> to vector<16x256xf32>
      %41 = arith.addf %39, %40 : vector<16x256xf32>
      %cst_9 = arith.constant 0.000000e+00 : f32
      %42 = vector.broadcast %cst_9 : f32 to vector<16x256xf32>
      %43 = arith.cmpf oge, %32, %42 : vector<16x256xf32>
      %cst_10 = arith.constant 0.000000e+00 : f32
      %44 = vector.broadcast %cst_10 : f32 to vector<16x256xf32>
      %45 = arith.cmpf oge, %41, %44 : vector<16x256xf32>
      %46 = arith.andi %43, %45 : vector<16x256xi1>
      %47 = arith.addf %32, %41 : vector<16x256xf32>
      %cst_11 = arith.constant 1.000000e+00 : f32
      %48 = vector.broadcast %cst_11 : f32 to vector<16x256xf32>
      %49 = arith.cmpf ole, %47, %48 : vector<16x256xf32>
      %50 = arith.andi %46, %49 : vector<16x256xi1>
      %51 = vector.broadcast %21 : vector<16x1xf32> to vector<16x256xf32>
      %52 = vector.broadcast %3 : vector<1x256xf32> to vector<16x256xf32>
      %53 = arith.mulf %51, %52 : vector<16x256xf32>
      %54 = vector.broadcast %22 : vector<16x1xf32> to vector<16x256xf32>
      %55 = vector.broadcast %4 : vector<1x256xf32> to vector<16x256xf32>
      %56 = arith.mulf %54, %55 : vector<16x256xf32>
      %57 = arith.addf %53, %56 : vector<16x256xf32>
      %58 = vector.broadcast %23 : vector<16x1xf32> to vector<16x256xf32>
      %59 = arith.addf %57, %58 : vector<16x256xf32>
      %60 = vector.broadcast %cst_3 : f32 to vector<16x256xf32>
      %61 = arith.select %50, %59, %60 : vector<16x256xi1>, vector<16x256xf32>
      %cst_12 = arith.constant dense<0xFF800000> : vector<256xf32>
      %62 = vector.multi_reduction <maximumf>, %61, %cst_12 [0] : vector<16x256xf32> to vector<256xf32>
      %63 = vector.shape_cast %62 : vector<256xf32> to vector<1x256xf32>
      %64 = vector.broadcast %63 : vector<1x256xf32> to vector<16x256xf32>
      %65 = arith.cmpf oge, %61, %64 : vector<16x256xf32>
      %66 = arith.extui %65 : vector<16x256xi1> to vector<16x256xi32>
      %67 = arith.sitofp %66 : vector<16x256xi32> to vector<16x256xf32>
      %cst_13 = arith.constant dense<0.000000e+00> : vector<256xf32>
      %68 = vector.multi_reduction <add>, %67, %cst_13 [0] : vector<16x256xf32> to vector<256xf32>
      %69 = vector.shape_cast %68 : vector<256xf32> to vector<1x256xf32>
      %cst_14 = arith.constant 1.000000e+00 : f32
      %70 = vector.broadcast %cst_14 : f32 to vector<1x256xf32>
      %71 = arith.maximumf %69, %70 : vector<1x256xf32>
      %cst_15 = arith.constant 1.000000e+00 : f32
      %72 = vector.broadcast %cst_15 : f32 to vector<1x256xf32>
      %73 = arith.divf %72, %71 : vector<1x256xf32>
      %74 = vector.extract_strided_slice %14 {offsets = [0, 9], sizes = [16, 9], strides = [1, 1]} : vector<16x18xf32> to vector<16x9xf32>
      %cst_16 = arith.constant dense<0.000000e+00> : vector<9x256xf32>
      %75 = tpu.matmul %74, %67, %cst_16 {dimension_numbers = #tpu.dot_dimension_numbers<[0], [0], [1], [1], [0, 1, 1, 1], [], []>} : vector<16x9xf32>, vector<16x256xf32>, vector<9x256xf32> -> vector<9x256xf32>
      %76 = vector.extract_strided_slice %75 {offsets = [0, 0], sizes = [3, 256], strides = [1, 1]} : vector<9x256xf32> to vector<3x256xf32>
      %77 = vector.broadcast %3 : vector<1x256xf32> to vector<3x256xf32>
      %78 = arith.mulf %76, %77 : vector<3x256xf32>
      %79 = vector.extract_strided_slice %75 {offsets = [3, 0], sizes = [3, 256], strides = [1, 1]} : vector<9x256xf32> to vector<3x256xf32>
      %80 = vector.broadcast %4 : vector<1x256xf32> to vector<3x256xf32>
      %81 = arith.mulf %79, %80 : vector<3x256xf32>
      %82 = arith.addf %78, %81 : vector<3x256xf32>
      %83 = vector.extract_strided_slice %75 {offsets = [6, 0], sizes = [3, 256], strides = [1, 1]} : vector<9x256xf32> to vector<3x256xf32>
      %84 = arith.addf %82, %83 : vector<3x256xf32>
      %85 = vector.broadcast %73 : vector<1x256xf32> to vector<3x256xf32>
      %86 = arith.mulf %84, %85 : vector<3x256xf32>
      %87 = arith.index_cast %arg7 : i32 to index
      %c0_17 = arith.constant 0 : index
      %c0_18 = arith.constant 0 : index
      %88 = vector.load %arg6[%87, %c0_17, %c0_18] : memref<4x1x256xf32, #tpu.memory_space<vmem>>, vector<1x1x256xf32>
      %89 = vector.shape_cast %63 : vector<1x256xf32> to vector<1x1x256xf32>
      %90 = arith.cmpf ogt, %89, %88 : vector<1x1x256xf32>
      %91 = vector.shape_cast %63 : vector<1x256xf32> to vector<1x1x256xf32>
      %92 = arith.maximumf %91, %88 : vector<1x1x256xf32>
      %93 = arith.index_cast %arg7 : i32 to index
      %c0_19 = arith.constant 0 : index
      %c0_20 = arith.constant 0 : index
      %94 = vector.load %arg6[%93, %c0_19, %c0_20] : memref<4x1x256xf32, #tpu.memory_space<vmem>>, vector<1x1x256xf32>
      tpu.vector_store %arg6[%93, %c0_19, %c0_20], %92 {strides = array<i32>} : memref<4x1x256xf32, #tpu.memory_space<vmem>>, vector<1x1x256xf32>,
      %95 = arith.index_cast %arg7 : i32 to index
      %c0_21 = arith.constant 0 : index
      %c0_22 = arith.constant 0 : index
      %96 = vector.load %arg5[%95, %c0_21, %c0_22] : memref<4x4x256xf32, #tpu.memory_space<vmem>>, vector<1x3x256xf32>
      %97 = vector.shape_cast %86 : vector<3x256xf32> to vector<1x3x256xf32>
      %98 = vector.shape_cast %90 : vector<1x1x256xi1> to vector<1x1x256xi1>
      %99 = vector.broadcast %98 : vector<1x1x256xi1> to vector<1x3x256xi1>
      %100 = arith.select %99, %97, %96 : vector<1x3x256xi1>, vector<1x3x256xf32>
      %101 = arith.index_cast %arg7 : i32 to index
      %c0_23 = arith.constant 0 : index
      %c0_24 = arith.constant 0 : index
      %102 = vector.load %arg5[%101, %c0_23, %c0_24] : memref<4x4x256xf32, #tpu.memory_space<vmem>>, vector<1x3x256xf32>
      tpu.vector_store %arg5[%101, %c0_23, %c0_24], %100 {strides = array<i32>} : memref<4x4x256xf32, #tpu.memory_space<vmem>>, vector<1x3x256xf32>,
    }
    %c4_i32_5 = arith.constant 4 : i32
    %c0_i32_6 = arith.constant 0 : i32
    %8 = arith.cmpi eq, %arg2, %c0_i32_6 : i32
    %9 = arith.extui %8 : i1 to i32
    %c0_i32_7 = arith.constant 0 : i32
    %10 = arith.cmpi ne, %9, %c0_i32_7 : i32
    scf.if %10 {
      %c0_8 = arith.constant 0 : index
      %c0_9 = arith.constant 0 : index
      %c0_10 = arith.constant 0 : index
      %11 = vector.load %arg6[%c0_8, %c0_9, %c0_10] : memref<4x1x256xf32, #tpu.memory_space<vmem>>, vector<4x1x256xf32>
      %cst_11 = arith.constant -1.000000e+29 : f32
      %12 = vector.broadcast %cst_11 : f32 to vector<4x1x256xf32>
      %13 = arith.cmpf ogt, %11, %12 : vector<4x1x256xf32>
      %14 = arith.extui %13 : vector<4x1x256xi1> to vector<4x1x256xi32>
      %15 = arith.sitofp %14 : vector<4x1x256xi32> to vector<4x1x256xf32>
      %c0_12 = arith.constant 0 : index
      %c3 = arith.constant 3 : index
      %c0_13 = arith.constant 0 : index
      %16 = vector.load %arg5[%c0_12, %c3, %c0_13] : memref<4x4x256xf32, #tpu.memory_space<vmem>>, vector<4x1x256xf32>
      tpu.vector_store %arg5[%c0_12, %c3, %c0_13], %15 {strides = array<i32>} : memref<4x4x256xf32, #tpu.memory_space<vmem>>, vector<4x1x256xf32>,
    } else {
    }
    return
  }
  func.func @transform_0(%arg0: i32, %arg1: i32, %arg2: i32) -> (i32, i32, i32) {
    %c0_i32 = arith.constant 0 : i32
    %c0_i32_0 = arith.constant 0 : i32
    %c0_i32_1 = arith.constant 0 : i32
    return %arg0, %c0_i32, %c0_i32_0 : i32, i32, i32
  }
  func.func @transform_1(%arg0: i32, %arg1: i32, %arg2: i32) -> (i32, i32) {
    %c0_i32 = arith.constant 0 : i32
    %c0_i32_0 = arith.constant 0 : i32
    return %c0_i32, %arg1 : i32, i32
  }
  func.func @transform_2(%arg0: i32, %arg1: i32, %arg2: i32) -> (i32, i32, i32) {
    %c0_i32 = arith.constant 0 : i32
    %c0_i32_0 = arith.constant 0 : i32
    return %arg0, %c0_i32, %arg1 : i32, i32, i32
  }
}

</mosaic_0001>

<llo_original>
// kernel: tpu_custom_call.1
$region0: #{tpu_custom_call.1}
  #allocation0 [shape = 'u32[]', space=smem, size = 0x4, offset = 0x4, fixed_abs, tag = 'smem constant byte address 0x4 - core index']
  #allocation1 [shape = 'u32[144,128]{1,0:T(1,128)}', space=vmem, size = 0x12000, scoped, tag = 'internal scratch']
  #allocation2 [shape = 'f32[4,1,256]{2,1,0:T(1,128)}', space=vmem, size = 0x1000, scoped, tag = 'scratch operand']
  %s0 = inlined_call_operand.hbm [shape: f32[8,16,18], index: 0, kind: input, shape index: {}]
  %s1 = inlined_call_operand.hbm [shape: f32[2,256], index: 1, kind: input, shape index: {}]
  %s2 = inlined_call_operand.hbm [shape: f32[8,4,256], index: 2, kind: output, shape index: {}]
  %s3 = sld [smem:[#allocation0]]
  $region64: #{tpu_custom_call.1} parent=0
    _
  %s5 = ssub.s32 1, %s3
  %s6 = scalar_select 0, %s5, %s3
  $region1: #{tpu_custom_call.1} parent=0
    #allocation3 [shape = 'u8[65536]{0}', space=vmem, size = 0x10000, scoped, tag = 'input window, operand 0']
    #allocation4 [shape = 's32[2]{0}', space=sflag, size = 0x8, scoped, tag = 'scoped memory for tpu_custom_call.1']
    #allocation5 [shape = 's32[2]{0}', space=sflag, size = 0x8, scoped, tag = 'scoped memory for tpu_custom_call.1']
    #allocation6 [shape = 'u8[2048]{0}', space=vmem, size = 0x800, scoped, tag = 'input window, operand 1, single buffered']
    #allocation7 [shape = 's32[1]{0}', space=sflag, size = 0x4, scoped, tag = 'scoped memory for tpu_custom_call.1']
    #allocation8 [shape = 'u8[32768]{0}', space=vmem, size = 0x8000, scoped, tag = 'output window, operand 0']
    %7 = vsyncpa [#allocation4], 0
    %s8 = scalar_lea.sflag [#allocation4], 1
    %9 = vsyncpa %s8, 0
    %10 = vsyncpa [#allocation7], 0
    %11 = vsyncpa [#allocation5], 0
    %s12 = scalar_lea.sflag [#allocation5], 1
    %13 = vsyncpa %s12, 0
    loop: start=0, step=1, limit=4
    $region2: #{tpu_custom_call.1} parent=1 // loop_pre_header
      _
    $region3: #{tpu_custom_call.1} parent=1 // loop_header
      %s15 = sphi 0, %s19
      %p16 = scmp.ge.s32.totalorder %s15, 4
      %s22 = sphi 0, %s41
      %s23 = sphi 0, %s37
      %s24 = sphi 0, %s33
      %s25 = sphi 0, %s22
      %s26 = sphi 0, %s23
      %s27 = sphi 0, %s24
      %s28 = sphi 0, %s25
      %s29 = sphi 0, %s26
      %s30 = sphi 0, %s27
      %s44 = sphi 0, %s46
      %s47 = sphi 0, %s44
      %s48 = sphi 0, %s47
      %s64 = sphi 0, %s48
      %s70 = sphi 0, %s72
      %s73 = sphi 0, %s70
      %s74 = sphi 0, %s73
      %s90 = sphi 0, %s74
      %s98 = sphi 0, %s100
      %s101 = sphi 0, %s98
      %s102 = sphi 0, %s101
      %s118 = sphi 0, %s102
    $region4: #{tpu_custom_call.1} parent=1 // loop_header_branch
      %18 = sbr.rel (%p16) target = $region8
    $region5: #{tpu_custom_call.1} parent=1 // loop_body
      %s20 = ssub.s32 %s15, 1
      %s21 = ssub.s32 %s15, 2
      %s31 = sadd.s32 1, %s24
      %p32 = scmp.ge.s32.totalorder %s31, 1
      %s33 = scalar_select %p32, 0, %s31
      %s34 = sadd.s32 1, %s23
      %s35 = scalar_select %p32, %s34, %s23
      %p36 = scmp.ge.s32.totalorder %s35, 1
      %s37 = scalar_select %p36, 0, %s35
      %s38 = sadd.s32 1, %s22
      %s39 = scalar_select %p36, %s38, %s22
      %p40 = scmp.ge.s32.totalorder %s39, 2
      %s41 = scalar_select %p40, 0, %s39
      %s42 = ssub.s32 %s22, %s41
      %p43 = scmp.eq.s32.totalorder %s42, 0
      %s45 = sadd.s32 %s44, 1
      %s46 = scalar_select %p43, %s44, %s45
      %p49 = pneg %p43
      %p50 = scmp.eq.s32.totalorder %s15, 1
      %p51 = por %p49, %p50
      %p52 = scmp.ne.s32.totalorder %s44, %s47
      %p53 = scmp.eq.s32.totalorder %s15, 0
      %p54 = por %p52, %p53
      %p55 = scmp.ne.s32.totalorder %s44, %s47
      %p56 = scmp.eq.s32.totalorder %s20, 1
      %p57 = por %p55, %p56
      %p58 = scmp.ne.s32.totalorder %s47, %s48
      %p59 = scmp.eq.s32.totalorder %s20, 0
      %p60 = por %p58, %p59
      %p61 = scmp.ne.s32.totalorder %s47, %s48
      %p62 = scmp.eq.s32.totalorder %s21, 1
      %p63 = por %p61, %p62
      %p65 = scmp.ne.s32.totalorder %s48, %s64
      %p66 = scmp.eq.s32.totalorder %s21, 0
      %p67 = por %p65, %p66
      %s68 = ssub.s32 %s23, %s37
      %p69 = scmp.eq.s32.totalorder %s68, 0
      %s71 = sadd.s32 %s70, 1
      %s72 = scalar_select %p69, %s70, %s71
      %p75 = pneg %p69
      %p76 = scmp.eq.s32.totalorder %s15, 1
      %p77 = por %p75, %p76
      %p78 = scmp.ne.s32.totalorder %s70, %s73
      %p79 = scmp.eq.s32.totalorder %s15, 0
      %p80 = por %p78, %p79
      %p81 = scmp.ne.s32.totalorder %s70, %s73
      %p82 = scmp.eq.s32.totalorder %s20, 1
      %p83 = por %p81, %p82
      %p84 = scmp.ne.s32.totalorder %s73, %s74
      %p85 = scmp.eq.s32.totalorder %s20, 0
      %p86 = por %p84, %p85
      %p87 = scmp.ne.s32.totalorder %s73, %s74
      %p88 = scmp.eq.s32.totalorder %s21, 1
      %p89 = por %p87, %p88
      %p91 = scmp.ne.s32.totalorder %s74, %s90
      %p92 = scmp.eq.s32.totalorder %s21, 0
      %p93 = por %p91, %p92
      %s94 = ssub.s32 %s22, %s41
      %s95 = ssub.s32 %s23, %s37
      %s96 = sor.u32 %s94, %s95
      %p97 = scmp.eq.s32.totalorder %s96, 0
      %s99 = sadd.s32 %s98, 1
      %s100 = scalar_select %p97, %s98, %s99
      %p103 = pneg %p97
      %p104 = scmp.eq.s32.totalorder %s15, 1
      %p105 = por %p103, %p104
      %p106 = scmp.ne.s32.totalorder %s98, %s101
      %p107 = scmp.eq.s32.totalorder %s15, 0
      %p108 = por %p106, %p107
      %p109 = scmp.ne.s32.totalorder %s98, %s101
      %p110 = scmp.eq.s32.totalorder %s20, 1
      %p111 = por %p109, %p110
      %p112 = scmp.ne.s32.totalorder %s101, %s102
      %p113 = scmp.eq.s32.totalorder %s20, 0
      %p114 = por %p112, %p113
      %p115 = scmp.ne.s32.totalorder %s101, %s102
      %p116 = scmp.eq.s32.totalorder %s21, 1
      %p117 = por %p115, %p116
      %p119 = scmp.ne.s32.totalorder %s102, %s118
      %p120 = scmp.eq.s32.totalorder %s21, 0
      %p121 = por %p119, %p120
      %p122 = scmp.le.s32.totalorder 1, %s15
      %p123 = scmp.lt.s32.totalorder %s15, 3
      %p124 = pnand %p122, %p123
      %p125 = pneg %p124
      // Predicated region
      $region9: #{tpu_custom_call.1} parent=5 // pred_check
        _
      $region10: #{tpu_custom_call.1} parent=5 // pred_check_branch
        %127 = sbr.rel (%p124) target = $region12
      $region11: #{tpu_custom_call.1} parent=5 // pred_region
        %s128 = ssub.s32 %s15, 1
        // Predicated region
        $region13: #{tpu_custom_call.1} parent=11 // pred_check
          %p129 = pneg %p86
        $region14: #{tpu_custom_call.1} parent=11 // pred_check_branch
          %131 = sbr.rel (%p129) target = $region16
        $region15: #{tpu_custom_call.1} parent=11 // pred_region
          %s132 = smul.u32 2, %s26
          %s134 = ssub.s32 64, 64
          %135 = vsyncadd [#allocation7], %s134
          %s136 = smul.addr %s132, 32
          %s137 = scalar_lea.hbm %s1, %s136
          %s139 = sshll.u32 [#allocation6], 4
          %s140 = int_to_ptr.vmem [resolvable:$true] %s139
          %142 = dma.hbm_to_vmem [thread:$0]  %s137, 64, %s140, [#allocation7]
        $region16: #{tpu_custom_call.1} parent=11 // pred_fallthru
          _
      $region12: #{tpu_custom_call.1} parent=5 // pred_fallthru
        _
      %p143 = scmp.lt.s32.totalorder %s15, 2
      // Predicated region
      $region17: #{tpu_custom_call.1} parent=5 // pred_check
        %p144 = pneg %p143
      $region18: #{tpu_custom_call.1} parent=5 // pred_check_branch
        %146 = sbr.rel (%p144) target = $region20
      $region19: #{tpu_custom_call.1} parent=5 // pred_region
        // Predicated region
        $region21: #{tpu_custom_call.1} parent=19 // pred_check
          %p147 = pneg %p54
        $region22: #{tpu_custom_call.1} parent=19 // pred_check_branch
          %149 = sbr.rel (%p147) target = $region24
        $region23: #{tpu_custom_call.1} parent=19 // pred_region
          %s150 = sand.u32 %s44, 1
          %s151 = scalar_lea.sflag [#allocation4], %s150
          %s152 = sand.u32 %s44, 1
          %s153 = smul.addr %s152, 64
          %s154 = scalar_lea.vmem [#allocation3], %s153
          %s155 = smul.u32 4, %s22
          %s157 = ssub.s32 1024, 1024
          %158 = vsyncadd %s151, %s157
          %s159 = smul.addr %s155, 2
          %s160 = smul.addr %s159, 128
          %s161 = scalar_lea.hbm %s0, %s160
          %s162 = sshll.u32 %s154, 4
          %s163 = int_to_ptr.vmem [resolvable:$true] %s162
          %168 = dma.hbm_to_vmem [thread:$0]  %s161, 1024, %s163, %s151, 128, 128, 8
        $region24: #{tpu_custom_call.1} parent=19 // pred_fallthru
          _
      $region20: #{tpu_custom_call.1} parent=5 // pred_fallthru
        _
      %p169 = scmp.le.s32.totalorder 1, %s15
      %p170 = scmp.lt.s32.totalorder %s15, 3
      %p171 = pnand %p169, %p170
      %p172 = pneg %p171
      // Predicated region
      $region25: #{tpu_custom_call.1} parent=5 // pred_check
        _
      $region26: #{tpu_custom_call.1} parent=5 // pred_check_branch
        %174 = sbr.rel (%p171) target = $region28
      $region27: #{tpu_custom_call.1} parent=5 // pred_region
        %s175 = ssub.s32 %s15, 1
        %s176 = sand.u32 %s47, 1
        %s177 = scalar_lea.sflag [#allocation4], %s176
        %s178 = sand.u32 %s47, 1
        %s179 = smul.addr %s178, 64
        %s180 = scalar_lea.vmem [#allocation3], %s179
        // Predicated region
        $region29: #{tpu_custom_call.1} parent=27 // pred_check
          %p181 = pneg %p60
        $region30: #{tpu_custom_call.1} parent=27 // pred_check_branch
          %183 = sbr.rel (%p181) target = $region32
        $region31: #{tpu_custom_call.1} parent=27 // pred_region
          %184 = dma.done %s177, 1024
        $region32: #{tpu_custom_call.1} parent=27 // pred_fallthru
          _
        // Predicated region
        $region33: #{tpu_custom_call.1} parent=27 // pred_check
          %p185 = pneg %p86
        $region34: #{tpu_custom_call.1} parent=27 // pred_check_branch
          %187 = sbr.rel (%p185) target = $region36
        $region35: #{tpu_custom_call.1} parent=27 // pred_region
          %188 = dma.done [#allocation7], 64
        $region36: #{tpu_custom_call.1} parent=27 // pred_fallthru
          _
        %s189 = sand.u32 %s47, 1
        %s190 = scalar_lea.sflag [#allocation4], %s189
        %s191 = sand.u32 %s47, 1
        %s192 = smul.addr %s191, 64
        %s193 = scalar_lea.vmem [#allocation3], %s192
        %p194 = pneg %p60
        %p195 = pneg %p57
        %p196 = pneg %p86
        %p197 = pneg %p83
        %p198 = pneg %p114
        %p199 = pneg %p111
        %s200 = sand.u32 %s101, 1
        %s201 = scalar_lea.sflag [#allocation5], %s200
        %s202 = sand.u32 %s101, 1
        %s203 = smul.addr %s202, 32
        %s204 = scalar_lea.vmem [#allocation8], %s203
        %s205 = smul.u32 4, %s25
        %s206 = smul.u32 2, %s26
        %s207 = smul.u32 4, %s25
        %s208 = smul.u32 2, %s26
        %p209 = scmp.eq.s32.totalorder %s27, 0
        // Predicated region
        $region37: #{tpu_custom_call.1} parent=27 // pred_check
          %p210 = pneg %p209
        $region38: #{tpu_custom_call.1} parent=27 // pred_check_branch
          %212 = sbr.rel (%p210) target = $region40
        $region39: #{tpu_custom_call.1} parent=27 // pred_region
          %213 = vst [vmem:[%s204] sm:$0xff] 0.0
          %214 = vst [vmem:[%s204 + $0x8] sm:$0xff] 0.0
          %215 = vst [vmem:[%s204 + $0x10] sm:$0xff] 0.0
          %216 = vst [vmem:[%s204 + $0x18] sm:$0xff] 0.0
          %v217 = vlaneseq
          %vm218 = vcmp.ge.s32.totalorder %v217, 0
          %vm219 = vcmp.lt.s32.totalorder %v217, 256
          %vm220 = vmand %vm218, %vm219
          %221 = vst.msk [vmem:[#allocation2] sm:$0x3] %vm220, -1e+30
          %222 = vst.msk [vmem:[#allocation2 + $0x2] sm:$0x3] %vm220, -1e+30
          %223 = vst.msk [vmem:[#allocation2 + $0x4] sm:$0x3] %vm220, -1e+30
          %224 = vst.msk [vmem:[#allocation2 + $0x6] sm:$0x3] %vm220, -1e+30
        $region40: #{tpu_custom_call.1} parent=27 // pred_fallthru
          _
        %v225 = vld [vmem:[#allocation6] ss:$2 sm:$0x3]
        %s226 = scalar_lea.vmem [#allocation6], 1
        %v227 = vld [vmem:[%s226] ss:$2 sm:$0x3]
        %s228 = smul.u32 %s27, 16
        loop: start=0, step=1, limit=4
        $region41: #{tpu_custom_call.1} parent=27 // loop_pre_header
          _
        $region42: #{tpu_custom_call.1} parent=27 // loop_header
          %s230 = sphi 0, %s234
          %p231 = scmp.ge.s32.totalorder %s230, 4
        $region43: #{tpu_custom_call.1} parent=27 // loop_header_branch
          %233 = sbr.rel (%p231) target = $region47
        $region44: #{tpu_custom_call.1} parent=27 // loop_body
          %s235 = smul.u32 %s230, 16
          %s236 = sadd.s32 %s228, %s235
          %s237 = scalar_lea.vmem %s180, %s236 [#allocation3]
          %v238 = vld [vmem:[%s237] sm:$0xff]
          %v239 = vld [vmem:[%s237 + $0x8] sm:$0xff]
          %241 = vset.pattern.permute.xlu0 0
          %242 = vperm.xlu0 %241, %v238
          %v243 = vpop.permute.xlu0 %242
          %246 = vset.pattern.permute.xlu0 0
          %247 = vperm.xlu0 %246, %v239
          %v248 = vpop.permute.xlu0 %247
          %v251 = vlaneseq
          %v252 = vshrl.u32 %v251, 7
          %v253 = vsub.s32 0, %v252
          %v254 = vrot.slane %v225, %v253
          %v255 = vlaneseq
          %v256 = vshrl.u32 %v255, 7
          %v257 = vsub.s32 1, %v256
          %v258 = vrot.slane %v225, %v257
          %v261 = vmul.f32 %v243, %v254
          %v262 = vmul.f32 %v243, %v258
          %v263 = vmul.f32 %v248, %v254
          %v264 = vmul.f32 %v248, %v258
          %265 = vset.pattern.permute.xlu0 1
          %266 = vperm.xlu0 %265, %v238
          %v267 = vpop.permute.xlu0 %266
          %269 = vset.pattern.permute.xlu0 1
          %270 = vperm.xlu0 %269, %v239
          %v271 = vpop.permute.xlu0 %270
          %v274 = vlaneseq
          %v275 = vshrl.u32 %v274, 7
          %v276 = vsub.s32 0, %v275
          %v277 = vrot.slane %v227, %v276
          %v278 = vlaneseq
          %v279 = vshrl.u32 %v278, 7
          %v280 = vsub.s32 1, %v279
          %v281 = vrot.slane %v227, %v280
          %v284 = vmul.f32 %v267, %v277
          %v285 = vmul.f32 %v267, %v281
          %v286 = vmul.f32 %v271, %v277
          %v287 = vmul.f32 %v271, %v281
          %v288 = vadd.f32 %v261, %v284
          %v289 = vadd.f32 %v262, %v285
          %v290 = vadd.f32 %v263, %v286
          %v291 = vadd.f32 %v264, %v287
          %292 = vset.pattern.permute.xlu0 2
          %293 = vperm.xlu0 %292, %v238
          %v294 = vpop.permute.xlu0 %293
          %296 = vset.pattern.permute.xlu0 2
          %297 = vperm.xlu0 %296, %v239
          %v298 = vpop.permute.xlu0 %297
          %v300 = vadd.f32 %v288, %v294
          %v301 = vadd.f32 %v289, %v294
          %v302 = vadd.f32 %v290, %v298
          %v303 = vadd.f32 %v291, %v298
          %304 = vset.pattern.permute.xlu0 3
          %305 = vperm.xlu0 %304, %v238
          %v306 = vpop.permute.xlu0 %305
          %308 = vset.pattern.permute.xlu0 3
          %309 = vperm.xlu0 %308, %v239
          %v310 = vpop.permute.xlu0 %309
          %v312 = vmul.f32 %v306, %v254
          %v313 = vmul.f32 %v306, %v258
          %v314 = vmul.f32 %v310, %v254
          %v315 = vmul.f32 %v310, %v258
          %316 = vset.pattern.permute.xlu0 4
          %317 = vperm.xlu0 %316, %v238
          %v318 = vpop.permute.xlu0 %317
          %320 = vset.pattern.permute.xlu0 4
          %321 = vperm.xlu0 %320, %v239
          %v322 = vpop.permute.xlu0 %321
          %v324 = vmul.f32 %v318, %v277
          %v325 = vmul.f32 %v318, %v281
          %v326 = vmul.f32 %v322, %v277
          %v327 = vmul.f32 %v322, %v281
          %v328 = vadd.f32 %v312, %v324
          %v329 = vadd.f32 %v313, %v325
          %v330 = vadd.f32 %v314, %v326
          %v331 = vadd.f32 %v315, %v327
          %332 = vset.pattern.permute.xlu0 5
          %333 = vperm.xlu0 %332, %v238
          %v334 = vpop.permute.xlu0 %333
          %336 = vset.pattern.permute.xlu0 5
          %337 = vperm.xlu0 %336, %v239
          %v338 = vpop.permute.xlu0 %337
          %v340 = vadd.f32 %v328, %v334
          %v341 = vadd.f32 %v329, %v334
          %v342 = vadd.f32 %v330, %v338
          %v343 = vadd.f32 %v331, %v338
          %vm344 = vcmp.ge.f32.partialorder %v300, 0.0
          %vm345 = vcmp.ge.f32.partialorder %v301, 0.0
          %vm346 = vcmp.ge.f32.partialorder %v302, 0.0
          %vm347 = vcmp.ge.f32.partialorder %v303, 0.0
          %vm348 = vcmp.ge.f32.partialorder %v340, 0.0
          %vm349 = vcmp.ge.f32.partialorder %v341, 0.0
          %vm350 = vcmp.ge.f32.partialorder %v342, 0.0
          %vm351 = vcmp.ge.f32.partialorder %v343, 0.0
          %vm352 = vmand %vm344, %vm348
          %vm353 = vmand %vm345, %vm349
          %vm354 = vmand %vm346, %vm350
          %vm355 = vmand %vm347, %vm351
          %v356 = vadd.f32 %v300, %v340
          %v357 = vadd.f32 %v301, %v341
          %v358 = vadd.f32 %v302, %v342
          %v359 = vadd.f32 %v303, %v343
          %vm360 = vcmp.le.f32.partialorder %v356, 1.0
          %vm361 = vcmp.le.f32.partialorder %v357, 1.0
          %vm362 = vcmp.le.f32.partialorder %v358, 1.0
          %vm363 = vcmp.le.f32.partialorder %v359, 1.0
          %vm364 = vmand %vm352, %vm360
          %vm365 = vmand %vm353, %vm361
          %vm366 = vmand %vm354, %vm362
          %vm367 = vmand %vm355, %vm363
          %368 = vset.pattern.permute.xlu0 6
          %369 = vperm.xlu0 %368, %v238
          %v370 = vpop.permute.xlu0 %369
          %372 = vset.pattern.permute.xlu0 6
          %373 = vperm.xlu0 %372, %v239
          %v374 = vpop.permute.xlu0 %373
          %v376 = vmul.f32 %v370, %v254
          %v377 = vmul.f32 %v370, %v258
          %v378 = vmul.f32 %v374, %v254
          %v379 = vmul.f32 %v374, %v258
          %380 = vset.pattern.permute.xlu0 7
          %381 = vperm.xlu0 %380, %v238
          %v382 = vpop.permute.xlu0 %381
          %384 = vset.pattern.permute.xlu0 7
          %385 = vperm.xlu0 %384, %v239
          %v386 = vpop.permute.xlu0 %385
          %v388 = vmul.f32 %v382, %v277
          %v389 = vmul.f32 %v382, %v281
          %v390 = vmul.f32 %v386, %v277
          %v391 = vmul.f32 %v386, %v281
          %v392 = vadd.f32 %v376, %v388
          %v393 = vadd.f32 %v377, %v389
          %v394 = vadd.f32 %v378, %v390
          %v395 = vadd.f32 %v379, %v391
          %396 = vset.pattern.permute.xlu0 8
          %397 = vperm.xlu0 %396, %v238
          %v398 = vpop.permute.xlu0 %397
          %400 = vset.pattern.permute.xlu0 8
          %401 = vperm.xlu0 %400, %v239
          %v402 = vpop.permute.xlu0 %401
          %v404 = vadd.f32 %v392, %v398
          %v405 = vadd.f32 %v393, %v398
          %v406 = vadd.f32 %v394, %v402
          %v407 = vadd.f32 %v395, %v402
          %v408 = vsel %vm364, %v404, -1e+30
          %v409 = vsel %vm365, %v405, -1e+30
          %v410 = vsel %vm366, %v406, -1e+30
          %v411 = vsel %vm367, %v407, -1e+30
          %v412 = vmax.f32 %v408, %v410
          %v413 = vrot.slane %v412, 4
          %v414 = vmax.f32 %v412, %v413
          %v415 = vrot.slane %v414, 2
          %v416 = vmax.f32 %v414, %v415
          %v417 = vrot.slane %v416, 1
          %v418 = vmax.f32 %v416, %v417
          %v419 = vmax.f32 %v409, %v411
          %v420 = vrot.slane %v419, 4
          %v421 = vmax.f32 %v419, %v420
          %v422 = vrot.slane %v421, 2
          %v423 = vmax.f32 %v421, %v422
          %v424 = vrot.slane %v423, 1
          %v425 = vmax.f32 %v423, %v424
          %vm426 = vcmp.ge.f32.partialorder %v408, %v418
          %vm427 = vcmp.ge.f32.partialorder %v409, %v425
          %vm428 = vcmp.ge.f32.partialorder %v410, %v418
          %vm429 = vcmp.ge.f32.partialorder %v411, %v425
          %v430 = vsel %vm426, 1, 0
          %v431 = vsel %vm427, 1, 0
          %v432 = vsel %vm428, 1, 0
          %v433 = vsel %vm429, 1, 0
          %v434 = vcvt.s32.f32 %v430
          %v435 = vcvt.s32.f32 %v431
          %v436 = vcvt.s32.f32 %v432
          %v437 = vcvt.s32.f32 %v433
          %v438 = vadd.f32 %v434, %v436
          %v439 = vrot.slane %v438, 4
          %v440 = vadd.f32 %v438, %v439
          %v441 = vrot.slane %v440, 2
          %v442 = vadd.f32 %v440, %v441
          %v443 = vrot.slane %v442, 1
          %v444 = vadd.f32 %v442, %v443
          %v445 = vadd.f32 %v435, %v437
          %v446 = vrot.slane %v445, 4
          %v447 = vadd.f32 %v445, %v446
          %v448 = vrot.slane %v447, 2
          %v449 = vadd.f32 %v447, %v448
          %v450 = vrot.slane %v449, 1
          %v451 = vadd.f32 %v449, %v450
          %v452 = vmax.f32 %v444, 1.0
          %v453 = vmax.f32 %v451, 1.0
          %v454 = vrcp.pop %v452
          %v455 = vmul.f32 1.0, %v454
          %v456 = vrcp.pop %v453
          %v457 = vmul.f32 1.0, %v456
          %458 = vrot.lane.b32.xlu0 %v238, 119
          %v459 = vpop.permute.xlu0 %458
          %460 = vrot.lane.b32.xlu0 %v239, 119
          %v461 = vpop.permute.xlu0 %460
          %464 = vxpose.xlu0.b32.start [1/16] %v459, 128
          %465 = vxpose.xlu0.b32.cont [2/16] %v461, 128
          %466 = vxpose.xlu0.b32.cont [3/16] 0.0, 128
          %467 = vxpose.xlu0.b32.cont [4/16] 0.0, 128
          %468 = vxpose.xlu0.b32.cont [5/16] 0.0, 128
          %469 = vxpose.xlu0.b32.cont [6/16] 0.0, 128
          %470 = vxpose.xlu0.b32.cont [7/16] 0.0, 128
          %471 = vxpose.xlu0.b32.cont [8/16] 0.0, 128
          %472 = vxpose.xlu0.b32.cont [9/16] 0.0, 128
          %473 = vxpose.xlu0.b32.cont [10/16] 0.0, 128
          %474 = vxpose.xlu0.b32.cont [11/16] 0.0, 128
          %475 = vxpose.xlu0.b32.cont [12/16] 0.0, 128
          %476 = vxpose.xlu0.b32.cont [13/16] 0.0, 128
          %477 = vxpose.xlu0.b32.cont [14/16] 0.0, 128
          %478 = vxpose.xlu0.b32.cont [15/16] 0.0, 128
          %479 = vxpose.xlu0.b32.end [16/16] 0.0, 128
          %v480 = vpop.trf.xlu0
          %v481 = vpop.trf.xlu0
          %v482 = vpop.trf.xlu0
          %v483 = vpop.trf.xlu0
          %v484 = vpop.trf.xlu0
          %v485 = vpop.trf.xlu0
          %v486 = vpop.trf.xlu0
          %v487 = vpop.trf.xlu0
          %v488 = vpop.trf.xlu0
          %v489 = vpop.trf.xlu0
          %v490 = vpop.trf.xlu0
          %v491 = vpop.trf.xlu0
          %v492 = vpop.trf.xlu0
          %v493 = vpop.trf.xlu0
          %v494 = vpop.trf.xlu0
          %v495 = vpop.trf.xlu0
          %vm496 = vcmask 130048
          %v498 = vsel %vm496, %v480, 0
          %v501 = vsel %vm496, %v481, 0
          %503 = vmatprep.subr.mxu0 %v435
          %504 = vmatpush1.msra.mxu0 %v434
          %505 = vmatprep.subr.mxu0 %v437
          %506 = vmatpush1.msra.mxu0 %v436
          %507 = vmatprep.subr.mxu0 0.0
          %508 = vmatpush1.msra.mxu0 0.0
          %509 = vmatprep.subr.mxu0 0.0
          %510 = vmatpush1.msra.mxu0 0.0
          %511 = vmatprep.subr.mxu0 0.0
          %512 = vmatpush1.msra.mxu0 0.0
          %513 = vmatprep.subr.mxu0 0.0
          %514 = vmatpush1.msra.mxu0 0.0
          %515 = vmatprep.subr.mxu0 0.0
          %516 = vmatpush1.msra.mxu0 0.0
          %517 = vmatprep.subr.mxu0 0.0
          %518 = vmatpush1.msra.mxu0 0.0
          %519 = vmatprep.subr.mxu0 0.0
          %520 = vmatpush1.msra.mxu0 0.0
          %521 = vmatprep.subr.mxu0 0.0
          %522 = vmatpush1.msra.mxu0 0.0
          %523 = vmatprep.subr.mxu0 0.0
          %524 = vmatpush1.msra.mxu0 0.0
          %525 = vmatprep.subr.mxu0 0.0
          %526 = vmatpush1.msra.mxu0 0.0
          %527 = vmatprep.subr.mxu0 0.0
          %528 = vmatpush1.msra.mxu0 0.0
          %529 = vmatprep.subr.mxu0 0.0
          %530 = vmatpush1.msra.mxu0 0.0
          %531 = vmatprep.subr.mxu0 0.0
          %532 = vmatpush1.msra.mxu0 0.0
          %533 = vmatprep.subr.mxu0 0.0
          %534 = vmatpush1.msra.mxu0 0.0
          %535 = vmatprep.subr.mxu0 0.0
          %536 = vmatpush1.msra.mxu0 0.0
          %537 = vmatprep.subr.mxu0 0.0
          %538 = vmatpush1.msra.mxu0 0.0
          %539 = vmatprep.subr.mxu0 0.0
          %540 = vmatpush1.msra.mxu0 0.0
          %541 = vmatprep.subr.mxu0 0.0
          %542 = vmatpush1.msra.mxu0 0.0
          %543 = vmatprep.subr.mxu0 0.0
          %544 = vmatpush1.msra.mxu0 0.0
          %545 = vmatprep.subr.mxu0 0.0
          %546 = vmatpush1.msra.mxu0 0.0
          %547 = vmatprep.subr.mxu0 0.0
          %548 = vmatpush1.msra.mxu0 0.0
          %549 = vmatprep.subr.mxu0 0.0
          %550 = vmatpush1.msra.mxu0 0.0
          %551 = vmatprep.subr.mxu0 0.0
          %552 = vmatpush1.msra.mxu0 0.0
          %553 = vmatprep.subr.mxu0 0.0
          %554 = vmatpush1.msra.mxu0 0.0
          %555 = vmatprep.subr.mxu0 0.0
          %556 = vmatpush1.msra.mxu0 0.0
          %557 = vmatprep.subr.mxu0 0.0
          %558 = vmatpush1.msra.mxu0 0.0
          %559 = vmatprep.subr.mxu0 0.0
          %560 = vmatpush1.msra.mxu0 0.0
          %561 = vmatprep.subr.mxu0 0.0
          %562 = vmatpush1.msra.mxu0 0.0
          %563 = vmatprep.subr.mxu0 0.0
          %564 = vmatpush1.msra.mxu0 0.0
          %565 = vmatprep.subr.mxu0 0.0
          %566 = vmatpush1.msra.mxu0 0.0
          %567 = vmatprep.mubr.f32.mxu0 0.0
          %568 = vmatmul.mubr.f32.gmra.mrb[0].mxu0 %v498
          %v569 = vpop.f32.mrb[0].mxu0
          %v570 = vadd.f32 0.0, %v569
          %v571 = vpop.f32.mrb[0].mxu0
          %v572 = vadd.f32 0.0, %v571
          %573 = vmatprep.mubr.f32.mxu0 0.0
          %574 = vmatmul.mubr.f32.gmra.mrb[0].mxu0 %v501
          %v575 = vpop.f32.mrb[0].mxu0
          %v576 = vadd.f32 0.0, %v575
          %v577 = vpop.f32.mrb[0].mxu0
          %v578 = vadd.f32 0.0, %v577
          %579 = vdwg.mxu0
          %v580 = vmul.f32 %v570, %v254
          %v581 = vmul.f32 %v572, %v258
          %v582 = vmul.f32 %v570, %v277
          %v583 = vmul.f32 %v572, %v281
          %v586 = vrot.slane %v582, 3
          %v587 = vrot.slane %v583, 3
          %v590 = vadd.f32 %v580, %v586
          %v591 = vadd.f32 %v581, %v587
          %vm596 = vcmask 1041408
          %v597 = vrot.slane %v570, 6
          %v598 = vrot.slane %v576, 6
          %v599 = vsel %vm596, %v597, %v598
          %v600 = vrot.slane %v572, 6
          %v601 = vrot.slane %v578, 6
          %v602 = vsel %vm596, %v600, %v601
          %v605 = vadd.f32 %v590, %v599
          %v606 = vadd.f32 %v591, %v602
          %v607 = vmul.f32 %v605, %v455
          %v608 = vmul.f32 %v606, %v457
          %s609 = smul.u32 %s230, 2
          %s610 = scalar_lea.vmem [#allocation2], %s609
          %v611 = vld [vmem:[%s610] sm:$0x3]
          %v613 = vlaneseq
          %v614 = vshrl.u32 %v613, 7
          %v615 = vsub.s32 0, %v614
          %v616 = vrot.slane %v611, %v615
          %v617 = vlaneseq
          %v618 = vshrl.u32 %v617, 7
          %v619 = vsub.s32 1, %v618
          %v620 = vrot.slane %v611, %v619
          %vm623 = vcmp.gt.f32.partialorder %v418, %v616
          %vm624 = vcmp.gt.f32.partialorder %v425, %v620
          %v625 = vmax.f32 %v418, %v616
          %v626 = vmax.f32 %v425, %v620
          %v629 = vcombine.low %v625, %v626
          %v631 = vunpack.c.l.s4 1966171168
          %v632 = vunpack.c.0.s8 %v631
          %v633 = vlaneseq
          %v634 = vshrl.u32 %v633, 7
          %v635 = vsub.s32 %v632, %v634
          %v636 = vrot.slane %v629, %v635
          %v638 = vunpack.c.l.s4 1966171168
          %v639 = vunpack.c.0.s8 %v638
          %v640 = vlaneseq
          %v641 = vshrl.u32 %v640, 7
          %v642 = vsub.s32 %v639, %v641
          %v643 = vrot.slane %v636, %v642
          %v645 = vlaneseq
          %vm646 = vcmp.ge.s32.totalorder %v645, 0
          %vm647 = vcmp.lt.s32.totalorder %v645, 256
          %vm648 = vmand %vm646, %vm647
          %649 = vst.msk [vmem:[%s610] sm:$0x3] %vm648, %v643
          %s650 = smul.addr %s609, 4
          %s651 = scalar_lea.vmem %s204, %s650 [#allocation8]
          %v652 = vld [vmem:[%s651] sm:$0x77]
          %v653 = vsel %vm623, 1, 0
          %v654 = vsel %vm624, 1, 0
          %v655 = vlaneseq
          %v656 = vshrl.u32 %v655, 7
          %v657 = vsub.s32 0, %v656
          %v658 = vrot.slane %v653, %v657
          %v659 = vlaneseq
          %v660 = vshrl.u32 %v659, 7
          %v661 = vsub.s32 0, %v660
          %v662 = vrot.slane %v654, %v661
          %vm663 = vcmp.eq.s32.totalorder %v658, 1
          %vm664 = vcmp.eq.s32.totalorder %v662, 1
          %v666 = vcombine.high %v652, %v652
          %v668 = vsel %vm663, %v607, %v652
          %v669 = vsel %vm664, %v608, %v666
          %v672 = vcombine.low %v668, %v669
          %674 = vst [vmem:[%s651] sm:$0x77] %v672
        $region45: #{tpu_custom_call.1} parent=27 // loop_footer
          %s234 = sadd.s32 1, %s230
        $region46: #{tpu_custom_call.1} parent=27 // loop_footer_branch
          %229 = sbr.rel target = $region42
        $region47: #{tpu_custom_call.1} parent=27 // loop_exit
          _
        // Predicated region
        $region48: #{tpu_custom_call.1} parent=27 // pred_check
          %p675 = pneg %p209
        $region49: #{tpu_custom_call.1} parent=27 // pred_check_branch
          %677 = sbr.rel (%p675) target = $region51
        $region50: #{tpu_custom_call.1} parent=27 // pred_region
          %v678 = vld [vmem:[#allocation2] sm:$0x3]
          %v679 = vld [vmem:[#allocation2 + $0x2] sm:$0x3]
          %v680 = vld [vmem:[#allocation2 + $0x4] sm:$0x3]
          %v681 = vld [vmem:[#allocation2 + $0x6] sm:$0x3]
          %vm682 = vcmp.gt.f32.partialorder %v678, -1e+29
          %vm683 = vcmp.gt.f32.partialorder %v679, -1e+29
          %vm684 = vcmp.gt.f32.partialorder %v680, -1e+29
          %vm685 = vcmp.gt.f32.partialorder %v681, -1e+29
          %v686 = vsel %vm682, 1, 0
          %v687 = vsel %vm683, 1, 0
          %v688 = vsel %vm684, 1, 0
          %v689 = vsel %vm685, 1, 0
          %v690 = vcvt.s32.f32 %v686
          %v691 = vcvt.s32.f32 %v687
          %v692 = vcvt.s32.f32 %v688
          %v693 = vcvt.s32.f32 %v689
          %v694 = vlaneseq
          %vm695 = vcmp.ge.s32.totalorder %v694, 0
          %vm696 = vcmp.lt.s32.totalorder %v694, 256
          %vm697 = vmand %vm695, %vm696
          %s698 = scalar_lea.vmem %s204, 3 [#allocation8]
          %699 = vst.msk [vmem:[%s698] ss:$4 sm:$0x3] %vm697, %v690
          %s700 = scalar_lea.vmem %s204, 11 [#allocation8]
          %701 = vst.msk [vmem:[%s700] ss:$4 sm:$0x3] %vm697, %v691
          %s702 = scalar_lea.vmem %s204, 19 [#allocation8]
          %703 = vst.msk [vmem:[%s702] ss:$4 sm:$0x3] %vm697, %v692
          %s704 = scalar_lea.vmem %s204, 27 [#allocation8]
          %705 = vst.msk [vmem:[%s704] ss:$4 sm:$0x3] %vm697, %v693
        $region51: #{tpu_custom_call.1} parent=27 // pred_fallthru
          _
        %s706 = sand.u32 %s101, 1
        %s707 = scalar_lea.sflag [#allocation5], %s706
        %s708 = sand.u32 %s101, 1
        %s709 = smul.addr %s708, 32
        %s710 = scalar_lea.vmem [#allocation8], %s709
        // Predicated region
        $region52: #{tpu_custom_call.1} parent=27 // pred_check
          %p711 = pneg %p111
        $region53: #{tpu_custom_call.1} parent=27 // pred_check_branch
          %713 = sbr.rel (%p711) target = $region55
        $region54: #{tpu_custom_call.1} parent=27 // pred_region
          %s714 = smul.u32 4, %s25
          %s715 = smul.u32 2, %s26
          %s717 = ssub.s32 512, 512
          %718 = vsyncadd %s707, %s717
          %s719 = smul.addr %s714, 2
          %s720 = sadd.s32 %s715, %s719
          %s721 = smul.addr %s720, 64
          %s722 = scalar_lea.hbm %s2, %s721
          %s723 = sshll.u32 %s710, 4
          %s724 = int_to_ptr.vmem [resolvable:$true] %s723
          %729 = dma.vmem_to_hbm [thread:$0]  %s724, 512, %s722, %s707, 128, 128, 8
        $region55: #{tpu_custom_call.1} parent=27 // pred_fallthru
          _
      $region28: #{tpu_custom_call.1} parent=5 // pred_fallthru
        _
      %p730 = scmp.le.s32.totalorder 2, %s15
      // Predicated region
      $region56: #{tpu_custom_call.1} parent=5 // pred_check
        %p731 = pneg %p730
      $region57: #{tpu_custom_call.1} parent=5 // pred_check_branch
        %733 = sbr.rel (%p731) target = $region59
      $region58: #{tpu_custom_call.1} parent=5 // pred_region
        %s734 = ssub.s32 %s15, 2
        // Predicated region
        $region60: #{tpu_custom_call.1} parent=58 // pred_check
          %p735 = pneg %p117
        $region61: #{tpu_custom_call.1} parent=58 // pred_check_branch
          %737 = sbr.rel (%p735) target = $region63
        $region62: #{tpu_custom_call.1} parent=58 // pred_region
          %s738 = sand.u32 %s102, 1
          %s739 = scalar_lea.sflag [#allocation5], %s738
          %s740 = sand.u32 %s102, 1
          %s741 = smul.addr %s740, 32
          %s742 = scalar_lea.vmem [#allocation8], %s741
          %743 = dma.done %s739, 512
        $region63: #{tpu_custom_call.1} parent=58 // pred_fallthru
          _
      $region59: #{tpu_custom_call.1} parent=5 // pred_fallthru
        _
    $region6: #{tpu_custom_call.1} parent=1 // loop_footer
      %s19 = sadd.s32 1, %s15
    $region7: #{tpu_custom_call.1} parent=1 // loop_footer_branch
      %14 = sbr.rel target = $region3
    $region8: #{tpu_custom_call.1} parent=1 // loop_exit
      _
    %744 = vsyncpa [#allocation4], 1
    %s745 = scalar_lea.sflag [#allocation4], 1
    %746 = vsyncpa %s745, 1
    %747 = vsyncpa [#allocation7], 1
    %748 = vsyncpa [#allocation5], 1
    %s749 = scalar_lea.sflag [#allocation5], 1
    %750 = vsyncpa %s749, 1

</llo_original>
